<compile_context>
chip_gen: v7x
topology: tpu7x:2x2x1
jax: 0.10.0
libtpu: 0.0.40
codegen_flags: <defaults>
</compile_context>

<pallas_src>
from functools import partial

import jax
import jax.numpy as jnp
from jax import lax
from jax.experimental import pallas as pl
from jax.experimental.pallas import tpu as pltpu

_LANES = 128                 # vreg lane width
_MAX_BLOCK_ROWS = 2048       # (2, 2048, 128) f32 = 2 MiB per pipeline buffer
_SINGLE_BLOCK_ROWS = 256     # at/below this many rows: one full-array block


def _round_up(x, m):
    return ((x + m - 1) // m) * m


def _pick_block_rows(rows):
    """Rows per block: <=256 rows -> single block; otherwise >=2 balanced grid
    steps (v7x megacore / pipelining), capped at 2 MiB per pipeline buffer."""
    if rows <= _SINGLE_BLOCK_ROWS:
        return rows
    return min(_MAX_BLOCK_ROWS, _round_up(pl.cdiv(rows, 2), 8))


def _make_kernel(negative_slope):
    slope = float(negative_slope)  # Python literal -> folded into the jaxpr

    def kernel(thr_ref, x_ref, o_ref):
        # x_ref / o_ref: (2, block_rows, 128) f32; plane 0 = real, 1 = imag.
        re = x_ref[0]
        im = x_ref[1]
        thr = thr_ref[0]                                   # SMEM scalar

        sumsq = re * re + im * im
        nonzero = sumsq > 0.0
        # Guarded rsqrt: one EUP push + two muls instead of sqrt + f32 divide.
        # TODO(synk): naive re^2+im^2 (no hypot scaling) under/overflows for
        # |z| outside ~[1e-19, 1.8e19]; acceptable for activation-range inputs.
        inv = lax.rsqrt(jnp.where(nonzero, sumsq, 1.0))
        modulus = sumsq * inv                              # == |z| when nonzero
        shifted = modulus + thr
        act = jnp.where(shifted > 0.0, shifted, slope * shifted)
        scale = act * inv                                  # act / |z| (finite)
        # out = act * exp(i*angle(z)); for z == 0, angle == 0 -> (act, 0).
        o_ref[0] = jnp.where(nonzero, re * scale, act)
        o_ref[1] = im * scale                              # im == 0 when z == 0

    return kernel


@partial(jax.jit, static_argnames=("negative_slope",))
def complex_mod_leaky_relu(x, threshold, negative_slope=0.01):
    """Pallas TPU forward pass of ComplexModLeakyReLU."""
    if x.dtype != jnp.complex64:
        # TODO(synk): complex128 would silently change dtype; reject instead.
        raise ValueError(f"expected complex64 input, got {x.dtype}")
    orig_shape = x.shape
    n = x.size

    thr = jnp.asarray(threshold, dtype=jnp.float32).reshape((1,))

    # Pad only to a multiple of 8*128 elements (<= 4 KiB) so the planar
    # (2, rows, 128) reshape is exact; the trailing partial *block* is handled
    # by Pallas' boundary masking, not by padding.
    n_pad = _round_up(n, 8 * _LANES)
    rows_pad = n_pad // _LANES

    re = jnp.real(x).reshape(-1)
    im = jnp.imag(x).reshape(-1)
    if n_pad != n:  # zero padding feeds only lanes that are sliced away below
        re = jnp.pad(re, (0, n_pad - n))
        im = jnp.pad(im, (0, n_pad - n))
    # One fused XLA pass (under jit): plane 0 = real, plane 1 = imag.
    planes = jnp.stack([re, im]).reshape(2, rows_pad, _LANES)

    block_rows = _pick_block_rows(rows_pad)
    grid = (pl.cdiv(rows_pad, block_rows),)

    spec = pl.BlockSpec((2, block_rows, _LANES), lambda i: (0, i, 0))
    out = pl.pallas_call(
        _make_kernel(negative_slope),
        out_shape=jax.ShapeDtypeStruct((2, rows_pad, _LANES), jnp.float32),
        grid=grid,
        in_specs=[
            pl.BlockSpec(memory_space=pltpu.MemorySpace.SMEM),  # threshold
            spec,                                               # re/im planes
        ],
        out_specs=spec,
        compiler_params=pltpu.CompilerParams(
            dimension_semantics=("parallel",),   # megacore-shardable on v7x
            vmem_limit_bytes=32 * 1024 * 1024,   # explicit budget, all gens
        ),
    )(thr, planes)

    # One fused XLA pass back to complex64 (slice only when we padded).
    out = out.reshape(2, n_pad)
    if n_pad != n:
        out = out[:, :n]
    return lax.complex(out[0].reshape(orig_shape), out[1].reshape(orig_shape))


def _reference(x, threshold, negative_slope=0.01):
    """Pure-JAX mirror of the PyTorch forward pass."""
    modulus = jnp.abs(x)
    angle = jnp.angle(x)
    shifted = modulus + threshold
    activated = jnp.where(shifted > 0, shifted, negative_slope * shifted)
    return activated * jnp.exp(1j * angle)


if __name__ == "__main__":
    key = jax.random.PRNGKey(0)
    kr, ki = jax.random.split(key)
    shape = (2, 4, 16, 16)               # NCHW feature map, in_features = 4
    re = jax.random.normal(kr, shape, dtype=jnp.float32)
    im = jax.random.normal(ki, shape, dtype=jnp.float32)
    x = lax.complex(re, im)              # complex64

    threshold = jnp.float32(0.5)         # nn.Parameter, init_threshold = 0.5
    out = jax.block_until_ready(
        complex_mod_leaky_relu(x, threshold, negative_slope=0.01))
    ref = _reference(x, threshold, 0.01)
    assert out.shape == x.shape and out.dtype == x.dtype
    assert jnp.allclose(out, ref, atol=1e-5, rtol=1e-5), (
        "max |err| = %g" % float(jnp.max(jnp.abs(out - ref))))

    # Leaky (negative) branch: negative threshold makes modulus + threshold < 0
    # for small-modulus elements.
    thr_neg = jnp.float32(-1.0)
    out2 = jax.block_until_ready(complex_mod_leaky_relu(x, thr_neg))
    ref2 = _reference(x, thr_neg, 0.01)
    assert jnp.allclose(out2, ref2, atol=1e-5, rtol=1e-5)

    # Odd element count (element padding path) and a multi-step grid with a
    # masked partial trailing block (rows_pad=504, block_rows=256, grid=2).
    for seed, shape2 in ((1, (3, 5, 17)), (2, (40, 40, 40))):
        k1, k2 = jax.random.split(jax.random.PRNGKey(seed))
        x2 = lax.complex(jax.random.normal(k1, shape2, dtype=jnp.float32),
                         jax.random.normal(k2, shape2, dtype=jnp.float32))
        o2 = jax.block_until_ready(complex_mod_leaky_relu(x2, threshold))
        r2 = _reference(x2, threshold, 0.01)
        assert jnp.allclose(o2, r2, atol=1e-5, rtol=1e-5)

    print("KERNEL_OK")
</pallas_src>

<mosaic_0001>
module attributes {stable_mosaic.version = 11 : i64} {
  func.func @kernel(%arg0: i32, %arg1: memref<1xf32, #tpu.memory_space<smem>>, %arg2: memref<2x16x128xf32, #tpu.memory_space<vmem>>, %arg3: memref<2x16x128xf32, #tpu.memory_space<vmem>>) attributes {dimension_semantics = [#tpu.dimension_semantics<parallel>], iteration_bounds = array<i64: 1>, scalar_prefetch = 0 : i64, scratch_operands = 0 : i64, tpu.core_type = #tpu.core_type<tc>, window_params = [{transform_indices = @transform_0, window_bounds = array<i64: 1>}, {transform_indices = @transform_1, window_bounds = array<i64: 2, 16, 128>}, {transform_indices = @transform_2, window_bounds = array<i64: 2, 16, 128>}]} {
    %c0 = arith.constant 0 : index
    %c0_0 = arith.constant 0 : index
    %c0_1 = arith.constant 0 : index
    %0 = vector.load %arg2[%c0, %c0_0, %c0_1] : memref<2x16x128xf32, #tpu.memory_space<vmem>>, vector<1x16x128xf32>
    %1 = vector.shape_cast %0 : vector<1x16x128xf32> to vector<16x128xf32>
    %c1 = arith.constant 1 : index
    %c0_2 = arith.constant 0 : index
    %c0_3 = arith.constant 0 : index
    %2 = vector.load %arg2[%c1, %c0_2, %c0_3] : memref<2x16x128xf32, #tpu.memory_space<vmem>>, vector<1x16x128xf32>
    %3 = vector.shape_cast %2 : vector<1x16x128xf32> to vector<16x128xf32>
    %c0_4 = arith.constant 0 : index
    %4 = memref.load %arg1[%c0_4] : memref<1xf32, #tpu.memory_space<smem>>
    %5 = arith.mulf %1, %1 : vector<16x128xf32>
    %6 = arith.mulf %3, %3 : vector<16x128xf32>
    %7 = arith.addf %5, %6 : vector<16x128xf32>
    %cst = arith.constant 0.000000e+00 : f32
    %8 = vector.broadcast %cst : f32 to vector<16x128xf32>
    %9 = arith.cmpf ogt, %7, %8 : vector<16x128xf32>
    %cst_5 = arith.constant 1.000000e+00 : f32
    %10 = vector.broadcast %cst_5 : f32 to vector<16x128xf32>
    %11 = arith.select %9, %7, %10 : vector<16x128xi1>, vector<16x128xf32>
    %12 = math.rsqrt %11 : vector<16x128xf32>
    %13 = arith.mulf %7, %12 : vector<16x128xf32>
    %14 = vector.broadcast %4 : f32 to vector<16x128xf32>
    %15 = arith.addf %13, %14 : vector<16x128xf32>
    %cst_6 = arith.constant 0.000000e+00 : f32
    %16 = vector.broadcast %cst_6 : f32 to vector<16x128xf32>
    %17 = arith.cmpf ogt, %15, %16 : vector<16x128xf32>
    %cst_7 = arith.constant 0.00999999977 : f32
    %18 = vector.broadcast %cst_7 : f32 to vector<16x128xf32>
    %19 = arith.mulf %18, %15 : vector<16x128xf32>
    %20 = arith.select %17, %15, %19 : vector<16x128xi1>, vector<16x128xf32>
    %21 = arith.mulf %20, %12 : vector<16x128xf32>
    %22 = arith.mulf %1, %21 : vector<16x128xf32>
    %23 = arith.select %9, %22, %20 : vector<16x128xi1>, vector<16x128xf32>
    %c0_8 = arith.constant 0 : index
    %c0_9 = arith.constant 0 : index
    %c0_10 = arith.constant 0 : index
    %24 = vector.load %arg3[%c0_8, %c0_9, %c0_10] : memref<2x16x128xf32, #tpu.memory_space<vmem>>, vector<1x16x128xf32>
    %25 = vector.shape_cast %24 : vector<1x16x128xf32> to vector<16x128xf32>
    %26 = vector.shape_cast %23 : vector<16x128xf32> to vector<1x16x128xf32>
    tpu.vector_store %arg3[%c0_8, %c0_9, %c0_10], %26 {strides = array<i32>} : memref<2x16x128xf32, #tpu.memory_space<vmem>>, vector<1x16x128xf32>,
    %27 = arith.mulf %3, %21 : vector<16x128xf32>
    %c1_11 = arith.constant 1 : index
    %c0_12 = arith.constant 0 : index
    %c0_13 = arith.constant 0 : index
    %28 = vector.load %arg3[%c1_11, %c0_12, %c0_13] : memref<2x16x128xf32, #tpu.memory_space<vmem>>, vector<1x16x128xf32>
    %29 = vector.shape_cast %28 : vector<1x16x128xf32> to vector<16x128xf32>
    %30 = vector.shape_cast %27 : vector<16x128xf32> to vector<1x16x128xf32>
    tpu.vector_store %arg3[%c1_11, %c0_12, %c0_13], %30 {strides = array<i32>} : memref<2x16x128xf32, #tpu.memory_space<vmem>>, vector<1x16x128xf32>,
    return
  }
  func.func @transform_0(%arg0: i32) -> i32 {
    %c0_i32 = arith.constant 0 : i32
    %c0_i32_0 = arith.constant 0 : i32
    return %c0_i32 : i32
  }
  func.func @transform_1(%arg0: i32) -> (i32, i32, i32) {
    %c0_i32 = arith.constant 0 : i32
    %c0_i32_0 = arith.constant 0 : i32
    %c0_i32_1 = arith.constant 0 : i32
    return %c0_i32, %arg0, %c0_i32_0 : i32, i32, i32
  }
  func.func @transform_2(%arg0: i32) -> (i32, i32, i32) {
    %c0_i32 = arith.constant 0 : i32
    %c0_i32_0 = arith.constant 0 : i32
    %c0_i32_1 = arith.constant 0 : i32
    return %c0_i32, %arg0, %c0_i32_0 : i32, i32, i32
  }
}

</mosaic_0001>

<llo_original>
// kernel: custom-call.1
$region0: #{custom-call.1}
  %s0 = inlined_call_operand.hbm [shape: c64[2,4,16,16], index: 0, kind: input, shape index: {}]
  %s1 = inlined_call_operand.vmem [shape: f32[2,4,16,16], index: 1, kind: output, shape index: {}]
  %s2 = scalar_lea.hbm %s0, 2048
  $region1: #{custom-call.1} parent=0
    #allocation0 [shape = 's32[1]{0}', space=sflag, size = 0x4, scoped, tag = 'scoped memory for custom-call.1']
    %3 = vsyncpa [#allocation0], 0
    %s4 = sshll.u32 %s1, 4
    %s5 = int_to_ptr.vmem [resolvable:$true] %s4
    %7 = dma.hbm_to_vmem [thread:$0]  %s2, 2048, %s5, [#allocation0]
    %8 = dma.done [#allocation0], 2048
    %9 = vsyncpa [#allocation0], 1

// kernel: custom-call
$region0: #{custom-call}
  %s0 = inlined_call_operand.hbm [shape: c64[2,4,16,16], index: 0, kind: input, shape index: {}]
  %s1 = inlined_call_operand.vmem [shape: f32[2,4,16,16], index: 1, kind: output, shape index: {}]
  $region1: #{custom-call} parent=0
    #allocation0 [shape = 's32[1]{0}', space=sflag, size = 0x4, scoped, tag = 'scoped memory for custom-call']
    %2 = vsyncpa [#allocation0], 0
    %s3 = sshll.u32 %s1, 4
    %s4 = int_to_ptr.vmem [resolvable:$true] %s3
    %6 = dma.hbm_to_vmem [thread:$0]  %s0, 2048, %s4, [#allocation0]
    %7 = dma.done [#allocation0], 2048
    %8 = vsyncpa [#allocation0], 1

// kernel: squeeze.3
$region0: #{squeeze.3}
  %s0 = inlined_call_operand.vmem [shape: f32[2048], index: 0, kind: input, shape index: {}]
  %s1 = inlined_call_operand.vmem [shape: f32[2,4,16,16], index: 1, kind: output, shape index: {}]
  %v2 = vld [vmem:[%s0] sm:$0xff]
  %vm3 = vcmask 130048
  %4 = vst.msk [vmem:[%s1] ss:$8 sm:$0xf] %vm3, %v2
  %5 = vst.msk [vmem:[%s1] ss:$8 sm:$0xf0] %vm3, %v2
  %s6 = scalar_lea.vmem %s0, 8
  %v7 = vld [vmem:[%s6] sm:$0xff]
  %vm8 = vcmask 130048
  %s9 = scalar_lea.vmem %s1, 64
  %10 = vst.msk [vmem:[%s9] ss:$8 sm:$0xf] %vm8, %v7
  %s11 = scalar_lea.vmem %s1, 64
  %12 = vst.msk [vmem:[%s11] ss:$8 sm:$0xf0] %vm8, %v7
  %v13 = vld [vmem:[%s0] sm:$0xff]
  %14 = vrot.lane.b32.xlu0 %v13, 112
  %v15 = vpop.permute.xlu0 %14
  %vm16 = vcmask 130048
  %s17 = scalar_lea.vmem %s1, 1
  %18 = vst.msk [vmem:[%s17] ss:$8 sm:$0xf] %vm16, %v15
  %s19 = scalar_lea.vmem %s1, 1
  %20 = vst.msk [vmem:[%s19] ss:$8 sm:$0xf0] %vm16, %v15
  %s21 = scalar_lea.vmem %s0, 8
  %v22 = vld [vmem:[%s21] sm:$0xff]
  %23 = vrot.lane.b32.xlu0 %v22, 112
  %v24 = vpop.permute.xlu0 %23
  %vm25 = vcmask 130048
  %s26 = scalar_lea.vmem %s1, 65
  %27 = vst.msk [vmem:[%s26] ss:$8 sm:$0xf] %vm25, %v24
  %s28 = scalar_lea.vmem %s1, 65
  %29 = vst.msk [vmem:[%s28] ss:$8 sm:$0xf0] %vm25, %v24
  %v30 = vld [vmem:[%s0] sm:$0xff]
  %31 = vrot.lane.b32.xlu0 %v30, 96
  %v32 = vpop.permute.xlu0 %31
  %vm33 = vcmask 130048
  %s34 = scalar_lea.vmem %s1, 2
  %35 = vst.msk [vmem:[%s34] ss:$8 sm:$0xf] %vm33, %v32
  %s36 = scalar_lea.vmem %s1, 2
  %37 = vst.msk [vmem:[%s36] ss:$8 sm:$0xf0] %vm33, %v32
  %s38 = scalar_lea.vmem %s0, 8
  %v39 = vld [vmem:[%s38] sm:$0xff]
  %40 = vrot.lane.b32.xlu0 %v39, 96
  %v41 = vpop.permute.xlu0 %40
  %vm42 = vcmask 130048
  %s43 = scalar_lea.vmem %s1, 66
  %44 = vst.msk [vmem:[%s43] ss:$8 sm:$0xf] %vm42, %v41
  %s45 = scalar_lea.vmem %s1, 66
  %46 = vst.msk [vmem:[%s45] ss:$8 sm:$0xf0] %vm42, %v41
  %v47 = vld [vmem:[%s0] sm:$0xff]
  %48 = vrot.lane.b32.xlu0 %v47, 80
  %v49 = vpop.permute.xlu0 %48
  %vm50 = vcmask 130048
  %s51 = scalar_lea.vmem %s1, 3
  %52 = vst.msk [vmem:[%s51] ss:$8 sm:$0xf] %vm50, %v49
  %s53 = scalar_lea.vmem %s1, 3
  %54 = vst.msk [vmem:[%s53] ss:$8 sm:$0xf0] %vm50, %v49
  %s55 = scalar_lea.vmem %s0, 8
  %v56 = vld [vmem:[%s55] sm:$0xff]
  %57 = vrot.lane.b32.xlu0 %v56, 80
  %v58 = vpop.permute.xlu0 %57
  %vm59 = vcmask 130048
  %s60 = scalar_lea.vmem %s1, 67
  %61 = vst.msk [vmem:[%s60] ss:$8 sm:$0xf] %vm59, %v58
  %s62 = scalar_lea.vmem %s1, 67
  %63 = vst.msk [vmem:[%s62] ss:$8 sm:$0xf0] %vm59, %v58
  %v64 = vld [vmem:[%s0] sm:$0xff]
  %65 = vrot.lane.b32.xlu0 %v64, 64
  %v66 = vpop.permute.xlu0 %65
  %vm67 = vcmask 130048
  %s68 = scalar_lea.vmem %s1, 4
  %69 = vst.msk [vmem:[%s68] ss:$8 sm:$0xf] %vm67, %v66
  %s70 = scalar_lea.vmem %s1, 4
  %71 = vst.msk [vmem:[%s70] ss:$8 sm:$0xf0] %vm67, %v66
  %s72 = scalar_lea.vmem %s0, 8
  %v73 = vld [vmem:[%s72] sm:$0xff]
  %74 = vrot.lane.b32.xlu0 %v73, 64
  %v75 = vpop.permute.xlu0 %74
  %vm76 = vcmask 130048
  %s77 = scalar_lea.vmem %s1, 68
  %78 = vst.msk [vmem:[%s77] ss:$8 sm:$0xf] %vm76, %v75
  %s79 = scalar_lea.vmem %s1, 68
  %80 = vst.msk [vmem:[%s79] ss:$8 sm:$0xf0] %vm76, %v75
  %v81 = vld [vmem:[%s0] sm:$0xff]
  %82 = vrot.lane.b32.xlu0 %v81, 48
  %v83 = vpop.permute.xlu0 %82
  %vm84 = vcmask 130048
  %s85 = scalar_lea.vmem %s1, 5
  %86 = vst.msk [vmem:[%s85] ss:$8 sm:$0xf] %vm84, %v83
  %s87 = scalar_lea.vmem %s1, 5
  %88 = vst.msk [vmem:[%s87] ss:$8 sm:$0xf0] %vm84, %v83
  %s89 = scalar_lea.vmem %s0, 8
  %v90 = vld [vmem:[%s89] sm:$0xff]
  %91 = vrot.lane.b32.xlu0 %v90, 48
  %v92 = vpop.permute.xlu0 %91
  %vm93 = vcmask 130048
  %s94 = scalar_lea.vmem %s1, 69
  %95 = vst.msk [vmem:[%s94] ss:$8 sm:$0xf] %vm93, %v92
  %s96 = scalar_lea.vmem %s1, 69
  %97 = vst.msk [vmem:[%s96] ss:$8 sm:$0xf0] %vm93, %v92
  %v98 = vld [vmem:[%s0] sm:$0xff]
  %99 = vrot.lane.b32.xlu0 %v98, 32
  %v100 = vpop.permute.xlu0 %99
  %vm101 = vcmask 130048
  %s102 = scalar_lea.vmem %s1, 6
  %103 = vst.msk [vmem:[%s102] ss:$8 sm:$0xf] %vm101, %v100
  %s104 = scalar_lea.vmem %s1, 6
  %105 = vst.msk [vmem:[%s104] ss:$8 sm:$0xf0] %vm101, %v100
  %s106 = scalar_lea.vmem %s0, 8
  %v107 = vld [vmem:[%s106] sm:$0xff]
  %108 = vrot.lane.b32.xlu0 %v107, 32
  %v109 = vpop.permute.xlu0 %108
  %vm110 = vcmask 130048
  %s111 = scalar_lea.vmem %s1, 70
  %112 = vst.msk [vmem:[%s111] ss:$8 sm:$0xf] %vm110, %v109
  %s113 = scalar_lea.vmem %s1, 70
  %114 = vst.msk [vmem:[%s113] ss:$8 sm:$0xf0] %vm110, %v109
  %v115 = vld [vmem:[%s0] sm:$0xff]
  %116 = vrot.lane.b32.xlu0 %v115, 16
  %v117 = vpop.permute.xlu0 %116
  %vm118 = vcmask 130048
  %s119 = scalar_lea.vmem %s1, 7
  %120 = vst.msk [vmem:[%s119] ss:$8 sm:$0xf] %vm118, %v117
  %s121 = scalar_lea.vmem %s1, 7
  %122 = vst.msk [vmem:[%s121] ss:$8 sm:$0xf0] %vm118, %v117
  %s123 = scalar_lea.vmem %s0, 8
  %v124 = vld [vmem:[%s123] sm:$0xff]
  %125 = vrot.lane.b32.xlu0 %v124, 16
  %v126 = vpop.permute.xlu0 %125
  %vm127 = vcmask 130048
  %s128 = scalar_lea.vmem %s1, 71
  %129 = vst.msk [vmem:[%s128] ss:$8 sm:$0xf] %vm127, %v126
  %s130 = scalar_lea.vmem %s1, 71
  %131 = vst.msk [vmem:[%s130] ss:$8 sm:$0xf0] %vm127, %v126

// kernel: squeeze.2
$region0: #{squeeze.2}
  %s0 = inlined_call_operand.vmem [shape: f32[1,16,128], index: 0, kind: input, shape index: {}]
  %s1 = inlined_call_operand.vmem [shape: f32[2,4,16,16], index: 1, kind: output, shape index: {}]
  %v2 = vld [vmem:[%s0] sm:$0xff]
  %vm3 = vcmask 130048
  %4 = vst.msk [vmem:[%s1] ss:$8 sm:$0xf] %vm3, %v2
  %5 = vst.msk [vmem:[%s1] ss:$8 sm:$0xf0] %vm3, %v2
  %s6 = scalar_lea.vmem %s0, 8
  %v7 = vld [vmem:[%s6] sm:$0xff]
  %vm8 = vcmask 130048
  %s9 = scalar_lea.vmem %s1, 64
  %10 = vst.msk [vmem:[%s9] ss:$8 sm:$0xf] %vm8, %v7
  %s11 = scalar_lea.vmem %s1, 64
  %12 = vst.msk [vmem:[%s11] ss:$8 sm:$0xf0] %vm8, %v7
  %v13 = vld [vmem:[%s0] sm:$0xff]
  %14 = vrot.lane.b32.xlu0 %v13, 112
  %v15 = vpop.permute.xlu0 %14
  %vm16 = vcmask 130048
  %s17 = scalar_lea.vmem %s1, 1
  %18 = vst.msk [vmem:[%s17] ss:$8 sm:$0xf] %vm16, %v15
  %s19 = scalar_lea.vmem %s1, 1
  %20 = vst.msk [vmem:[%s19] ss:$8 sm:$0xf0] %vm16, %v15
  %s21 = scalar_lea.vmem %s0, 8
  %v22 = vld [vmem:[%s21] sm:$0xff]
  %23 = vrot.lane.b32.xlu0 %v22, 112
  %v24 = vpop.permute.xlu0 %23
  %vm25 = vcmask 130048
  %s26 = scalar_lea.vmem %s1, 65
  %27 = vst.msk [vmem:[%s26] ss:$8 sm:$0xf] %vm25, %v24
  %s28 = scalar_lea.vmem %s1, 65
  %29 = vst.msk [vmem:[%s28] ss:$8 sm:$0xf0] %vm25, %v24
  %v30 = vld [vmem:[%s0] sm:$0xff]
  %31 = vrot.lane.b32.xlu0 %v30, 96
  %v32 = vpop.permute.xlu0 %31
  %vm33 = vcmask 130048
  %s34 = scalar_lea.vmem %s1, 2
  %35 = vst.msk [vmem:[%s34] ss:$8 sm:$0xf] %vm33, %v32
  %s36 = scalar_lea.vmem %s1, 2
  %37 = vst.msk [vmem:[%s36] ss:$8 sm:$0xf0] %vm33, %v32
  %s38 = scalar_lea.vmem %s0, 8
  %v39 = vld [vmem:[%s38] sm:$0xff]
  %40 = vrot.lane.b32.xlu0 %v39, 96
  %v41 = vpop.permute.xlu0 %40
  %vm42 = vcmask 130048
  %s43 = scalar_lea.vmem %s1, 66
  %44 = vst.msk [vmem:[%s43] ss:$8 sm:$0xf] %vm42, %v41
  %s45 = scalar_lea.vmem %s1, 66
  %46 = vst.msk [vmem:[%s45] ss:$8 sm:$0xf0] %vm42, %v41
  %v47 = vld [vmem:[%s0] sm:$0xff]
  %48 = vrot.lane.b32.xlu0 %v47, 80
  %v49 = vpop.permute.xlu0 %48
  %vm50 = vcmask 130048
  %s51 = scalar_lea.vmem %s1, 3
  %52 = vst.msk [vmem:[%s51] ss:$8 sm:$0xf] %vm50, %v49
  %s53 = scalar_lea.vmem %s1, 3
  %54 = vst.msk [vmem:[%s53] ss:$8 sm:$0xf0] %vm50, %v49
  %s55 = scalar_lea.vmem %s0, 8
  %v56 = vld [vmem:[%s55] sm:$0xff]
  %57 = vrot.lane.b32.xlu0 %v56, 80
  %v58 = vpop.permute.xlu0 %57
  %vm59 = vcmask 130048
  %s60 = scalar_lea.vmem %s1, 67
  %61 = vst.msk [vmem:[%s60] ss:$8 sm:$0xf] %vm59, %v58
  %s62 = scalar_lea.vmem %s1, 67
  %63 = vst.msk [vmem:[%s62] ss:$8 sm:$0xf0] %vm59, %v58
  %v64 = vld [vmem:[%s0] sm:$0xff]
  %65 = vrot.lane.b32.xlu0 %v64, 64
  %v66 = vpop.permute.xlu0 %65
  %vm67 = vcmask 130048
  %s68 = scalar_lea.vmem %s1, 4
  %69 = vst.msk [vmem:[%s68] ss:$8 sm:$0xf] %vm67, %v66
  %s70 = scalar_lea.vmem %s1, 4
  %71 = vst.msk [vmem:[%s70] ss:$8 sm:$0xf0] %vm67, %v66
  %s72 = scalar_lea.vmem %s0, 8
  %v73 = vld [vmem:[%s72] sm:$0xff]
  %74 = vrot.lane.b32.xlu0 %v73, 64
  %v75 = vpop.permute.xlu0 %74
  %vm76 = vcmask 130048
  %s77 = scalar_lea.vmem %s1, 68
  %78 = vst.msk [vmem:[%s77] ss:$8 sm:$0xf] %vm76, %v75
  %s79 = scalar_lea.vmem %s1, 68
  %80 = vst.msk [vmem:[%s79] ss:$8 sm:$0xf0] %vm76, %v75
  %v81 = vld [vmem:[%s0] sm:$0xff]
  %82 = vrot.lane.b32.xlu0 %v81, 48
  %v83 = vpop.permute.xlu0 %82
  %vm84 = vcmask 130048
  %s85 = scalar_lea.vmem %s1, 5
  %86 = vst.msk [vmem:[%s85] ss:$8 sm:$0xf] %vm84, %v83
  %s87 = scalar_lea.vmem %s1, 5
  %88 = vst.msk [vmem:[%s87] ss:$8 sm:$0xf0] %vm84, %v83
  %s89 = scalar_lea.vmem %s0, 8
  %v90 = vld [vmem:[%s89] sm:$0xff]
  %91 = vrot.lane.b32.xlu0 %v90, 48
  %v92 = vpop.permute.xlu0 %91
  %vm93 = vcmask 130048
  %s94 = scalar_lea.vmem %s1, 69
  %95 = vst.msk [vmem:[%s94] ss:$8 sm:$0xf] %vm93, %v92
  %s96 = scalar_lea.vmem %s1, 69
  %97 = vst.msk [vmem:[%s96] ss:$8 sm:$0xf0] %vm93, %v92
  %v98 = vld [vmem:[%s0] sm:$0xff]
  %99 = vrot.lane.b32.xlu0 %v98, 32
  %v100 = vpop.permute.xlu0 %99
  %vm101 = vcmask 130048
  %s102 = scalar_lea.vmem %s1, 6
  %103 = vst.msk [vmem:[%s102] ss:$8 sm:$0xf] %vm101, %v100
  %s104 = scalar_lea.vmem %s1, 6
  %105 = vst.msk [vmem:[%s104] ss:$8 sm:$0xf0] %vm101, %v100
  %s106 = scalar_lea.vmem %s0, 8
  %v107 = vld [vmem:[%s106] sm:$0xff]
  %108 = vrot.lane.b32.xlu0 %v107, 32
  %v109 = vpop.permute.xlu0 %108
  %vm110 = vcmask 130048
  %s111 = scalar_lea.vmem %s1, 70
  %112 = vst.msk [vmem:[%s111] ss:$8 sm:$0xf] %vm110, %v109
  %s113 = scalar_lea.vmem %s1, 70
  %114 = vst.msk [vmem:[%s113] ss:$8 sm:$0xf0] %vm110, %v109
  %v115 = vld [vmem:[%s0] sm:$0xff]
  %116 = vrot.lane.b32.xlu0 %v115, 16
  %v117 = vpop.permute.xlu0 %116
  %vm118 = vcmask 130048
  %s119 = scalar_lea.vmem %s1, 7
  %120 = vst.msk [vmem:[%s119] ss:$8 sm:$0xf] %vm118, %v117
  %s121 = scalar_lea.vmem %s1, 7
  %122 = vst.msk [vmem:[%s121] ss:$8 sm:$0xf0] %vm118, %v117
  %s123 = scalar_lea.vmem %s0, 8
  %v124 = vld [vmem:[%s123] sm:$0xff]
  %125 = vrot.lane.b32.xlu0 %v124, 16
  %v126 = vpop.permute.xlu0 %125
  %vm127 = vcmask 130048
  %s128 = scalar_lea.vmem %s1, 71
  %129 = vst.msk [vmem:[%s128] ss:$8 sm:$0xf] %vm127, %v126
  %s130 = scalar_lea.vmem %s1, 71
  %131 = vst.msk [vmem:[%s130] ss:$8 sm:$0xf0] %vm127, %v126

// kernel: custom-call.2
$region0: #{custom-call.2}
  %s0 = inlined_call_operand.vmem [shape: f32[2,4,16,16], index: 0, kind: input, shape index: {}]
  %s1 = inlined_call_operand.vmem [shape: f32[2,4,16,16], index: 1, kind: input, shape index: {}]
  %s2 = inlined_call_operand.hbm [shape: c64[2,4,16,16], index: 2, kind: output, shape index: {}]
  %s3 = scalar_lea.hbm %s2, 2048
  $region1: #{custom-call.2} parent=0
    #allocation0 [shape = 's32[1]{0}', space=sflag, size = 0x4, scoped, tag = 'scoped memory for custom-call.2']
    %4 = vsyncpa [#allocation0], 0
    %s5 = sshll.u32 %s0, 4
    %s6 = int_to_ptr.vmem [resolvable:$true] %s5
    %8 = dma.vmem_to_hbm [thread:$0]  %s6, 2048, %s2, [#allocation0]
    %9 = dma.done [#allocation0], 2048
    %10 = vsyncpa [#allocation0], 1
  $region2: #{custom-call.2} parent=0
    #allocation1 [shape = 's32[1]{0}', space=sflag, size = 0x4, scoped, tag = 'scoped memory for custom-call.2']
    %11 = vsyncpa [#allocation1], 0
    %s12 = sshll.u32 %s1, 4
    %s13 = int_to_ptr.vmem [resolvable:$true] %s12
    %15 = dma.vmem_to_hbm [thread:$0]  %s13, 2048, %s3, [#allocation1]
    %16 = dma.done [#allocation1], 2048
    %17 = vsyncpa [#allocation1], 1

// kernel: complex_mod_leaky_relu.1
$region0: #{complex_mod_leaky_relu.1}
  #allocation0 [shape = 'u32[]', space=smem, size = 0x4, offset = 0x4, fixed_abs, tag = 'smem constant byte address 0x4 - core index']
  #allocation1 [shape = 'u32[144,128]{1,0:T(1,128)}', space=vmem, size = 0x12000, scoped, tag = 'internal scratch']
  #allocation2 [shape = 'f32[1]{0:T(128)S(6)}', space=smem, size = 0x200, scoped, tag = 'scoped memory for complex_mod_leaky_relu.1']
  %s0 = inlined_call_operand.<no memory space> [shape: f32[1], index: 0, kind: input, shape index: {}]
  %s1 = inlined_call_operand.vmem [shape: f32[2,16,128], index: 1, kind: input, shape index: {}]
  %s2 = inlined_call_operand.vmem [shape: f32[2,16,128], index: 2, kind: output, shape index: {}]
  %s3 = sld [smem:[#allocation0]]
  $region18: #{complex_mod_leaky_relu.1} parent=0
    _
  %s5 = ssub.s32 1, %s3
  %s6 = scalar_select 0, %s5, %s3
  %7 = sst [smem:[#allocation2]] %s0
  // Predicated region
  $region2: #{complex_mod_leaky_relu.1} parent=0 // pred_check
    _
  $region3: #{complex_mod_leaky_relu.1} parent=0 // pred_check_branch
    %9 = sbr.rel (0) target = $region5
  $region4: #{complex_mod_leaky_relu.1} parent=0 // pred_region
    _
  $region5: #{complex_mod_leaky_relu.1} parent=0 // pred_fallthru
    _
  // Predicated region
  $region6: #{complex_mod_leaky_relu.1} parent=0 // pred_check
    _
  $region7: #{complex_mod_leaky_relu.1} parent=0 // pred_check_branch
    %11 = sbr.rel (0) target = $region9
  $region8: #{complex_mod_leaky_relu.1} parent=0 // pred_region
    _
  $region9: #{complex_mod_leaky_relu.1} parent=0 // pred_fallthru
    _
  %v12 = vld [vmem:[%s1] sm:$0xff]
  %v13 = vld [vmem:[%s1 + $0x8] sm:$0xff]
  %s14 = scalar_lea.vmem %s1, 16
  %v15 = vld [vmem:[%s14] sm:$0xff]
  %v16 = vld [vmem:[%s14 + $0x8] sm:$0xff]
  %s17 = sld [smem:[#allocation2]]
  %v18 = vmul.f32 %v12, %v12
  %v19 = vmul.f32 %v13, %v13
  %v20 = vmul.f32 %v15, %v15
  %v21 = vmul.f32 %v16, %v16
  %v22 = vadd.f32 %v18, %v20
  %v23 = vadd.f32 %v19, %v21
  %vm24 = vcmp.gt.f32.partialorder %v22, 0.0
  %vm25 = vcmp.gt.f32.partialorder %v23, 0.0
  %v26 = vsel %vm24, %v22, 1.0
  %v27 = vsel %vm25, %v23, 1.0
  %v28 = vrsqrt.pop %v26
  %v29 = vrsqrt.pop %v27
  %v30 = vmul.f32 %v22, %v28
  %v31 = vmul.f32 %v23, %v29
  %v32 = vstv %s17
  %v33 = vadd.f32 %v30, %v32
  %v34 = vadd.f32 %v31, %v32
  %vm35 = vcmp.gt.f32.partialorder %v33, 0.0
  %vm36 = vcmp.gt.f32.partialorder %v34, 0.0
  %v37 = vmul.f32 %v33, 0.01
  %v38 = vmul.f32 %v34, 0.01
  %v39 = vsel %vm35, %v33, %v37
  %v40 = vsel %vm36, %v34, %v38
  %v41 = vmul.f32 %v39, %v28
  %v42 = vmul.f32 %v40, %v29
  %v43 = vmul.f32 %v12, %v41
  %v44 = vmul.f32 %v13, %v42
  %v45 = vsel %vm24, %v43, %v39
  %v46 = vsel %vm25, %v44, %v40
  %47 = vst [vmem:[%s2] sm:$0xff] %v45
  %48 = vst [vmem:[%s2 + $0x8] sm:$0xff] %v46
  %v49 = vmul.f32 %v15, %v41
  %v50 = vmul.f32 %v16, %v42
  %s51 = scalar_lea.vmem %s2, 16
  %52 = vst [vmem:[%s51] sm:$0xff] %v49
  %53 = vst [vmem:[%s51 + $0x8] sm:$0xff] %v50
  // Predicated region
  $region10: #{complex_mod_leaky_relu.1} parent=0 // pred_check
    _
  $region11: #{complex_mod_leaky_relu.1} parent=0 // pred_check_branch
    %55 = sbr.rel (0) target = $region13
  $region12: #{complex_mod_leaky_relu.1} parent=0 // pred_region
    _
  $region13: #{complex_mod_leaky_relu.1} parent=0 // pred_fallthru
    _
  // Predicated region
  $region14: #{complex_mod_leaky_relu.1} parent=0 // pred_check
    _
  $region15: #{complex_mod_leaky_relu.1} parent=0 // pred_check_branch
    %57 = sbr.rel (0) target = $region17
  $region16: #{complex_mod_leaky_relu.1} parent=0 // pred_region
    _
  $region17: #{complex_mod_leaky_relu.1} parent=0 // pred_fallthru
    _

</llo_original>
